<compile_context>
chip_gen: v7x
topology: tpu7x:2x2x1
jax: 0.10.0
libtpu: 0.0.40
codegen_flags: <defaults>
</compile_context>

<pallas_src>
import functools

import jax
import jax.numpy as jnp
from jax.experimental import pallas as pl
from jax.experimental.pallas import tpu as pltpu

BINS_LO = -3
NUM_BINS = 7                  # bins = [-3, -2, -1, 0, 1, 2, 3]
VOCAB = NUM_BINS + 1          # embedding rows = len(bins) + 1 = 8
DISTANCE_DIM = 20             # default distance_dim in the module
DROP_P = 0.2                  # nn.Dropout(0.2)


def _round_up(x, m):
    return ((x + m - 1) // m) * m


def _select_tree(idx, rows):
    """rows[idx] elementwise via a binary select tree on the 3 bits of idx.

    idx:  integer array (values in [0, 7]) broadcastable against each row.
    rows: list of 8 arrays (one per table row) broadcastable to the output.
    7 vector selects + 3 bit tests, pure VPU (no mul/add chain, no MXU/XLU).
    """
    b0 = (idx & 1) != 0
    b1 = (idx & 2) != 0
    b2 = (idx & 4) != 0
    e01 = jnp.where(b0, rows[1], rows[0])
    e23 = jnp.where(b0, rows[3], rows[2])
    e45 = jnp.where(b0, rows[5], rows[4])
    e67 = jnp.where(b0, rows[7], rows[6])
    e0123 = jnp.where(b1, e23, e01)
    e4567 = jnp.where(b1, e67, e45)
    return jnp.where(b2, e4567, e0123)


def distance_kernel(lengths_ref, emb_ref, *rest, training, transposed):
    # Module layout (transposed=False):
    #   lengths_ref (TN, 1) int32, emb_ref (8, D), [mask_ref (TN, D)], out (TN, D)
    # Lane-dense layout (transposed=True):
    #   lengths_ref (1, TN) int32, emb_ref (D, 8), [mask_ref (D, TN)], out (D, TN)
    if training:
        mask_ref, out_ref = rest
    else:
        mask_ref = None
        (out_ref,) = rest

    # stoi: #{b in [-3..3] : L >= b} == clip(L + 4, 0, 7).  Pure VPU.
    idx = jnp.clip(lengths_ref[...].astype(jnp.int32) - (BINS_LO - 1),
                   0, NUM_BINS)

    emb = emb_ref[...]
    if transposed:
        rows = [emb[:, r:r + 1] for r in range(VOCAB)]   # (D, 1) lane slices
    else:
        rows = [emb[r:r + 1, :] for r in range(VOCAB)]   # (1, D) row slices

    out = _select_tree(idx, rows)

    if training:
        # Fused Dropout(0.2): mask already holds {0, 1/(1-p)}, so a single
        # multiply applies both the drop and the rescale.
        out = out * mask_ref[...]

    out_ref[...] = out.astype(out_ref.dtype)


def distance_forward(lengths, emb_table, *, training=False, rng=None,
                     block_rows=4096, transposed_output=False,
                     vmem_limit_bytes=None):
    """lengths: (N,) int; emb_table: (VOCAB, D) float32.

    Returns (N, D) float32 (module layout) or, with transposed_output=True,
    (D, N) float32 in a lane-dense layout for fused consumers.
    """
    n = int(lengths.shape[0])
    d = int(emb_table.shape[1])

    # Row-tile geometry.  Module layout: rows live on sublanes (align 8).
    # Transposed layout: rows live on lanes (align 128).
    row_align = 128 if transposed_output else 8
    n_al = _round_up(max(n, 1), row_align)
    tn_max = min(_round_up(block_rows, row_align), n_al)
    num_tiles = pl.cdiv(n_al, tn_max)
    if num_tiles == 1 and n_al >= 256:
        num_tiles = 2                          # give both v7x TensorCores work
    tn = _round_up(-(-n_al // num_tiles), row_align)   # balanced tiles
    n_pad = tn * num_tiles

    lengths_flat = jnp.pad(lengths.astype(jnp.int32), (0, n_pad - n))
    emb_f32 = emb_table.astype(jnp.float32)

    if transposed_output:
        lengths_in = lengths_flat.reshape(1, n_pad)
        emb_in = emb_f32.T                                       # (D, VOCAB)
        in_specs = [pl.BlockSpec((1, tn), lambda i: (0, i)),
                    pl.BlockSpec((d, VOCAB), lambda i: (0, 0))]
        data_spec = pl.BlockSpec((d, tn), lambda i: (0, i))
        out_shape = jax.ShapeDtypeStruct((d, n_pad), jnp.float32)
        mask_shape = (d, n_pad)
    else:
        lengths_in = lengths_flat.reshape(n_pad, 1)
        emb_in = emb_f32                                         # (VOCAB, D)
        in_specs = [pl.BlockSpec((tn, 1), lambda i: (i, 0)),
                    pl.BlockSpec((VOCAB, d), lambda i: (0, 0))]
        data_spec = pl.BlockSpec((tn, d), lambda i: (i, 0))
        out_shape = jax.ShapeDtypeStruct((n_pad, d), jnp.float32)
        mask_shape = (n_pad, d)

    inputs = [lengths_in, emb_in]
    if training:
        if rng is None:
            rng = jax.random.PRNGKey(0)
        keep = jax.random.bernoulli(rng, 1.0 - DROP_P, mask_shape)
        # Pre-scale by 1/(1-p) so the kernel does a single multiply.
        mask = keep.astype(jnp.float32) * jnp.float32(1.0 / (1.0 - DROP_P))
        inputs.append(mask)
        in_specs = in_specs + [data_spec]

    bytes_accessed = 4 * n_pad + 4 * VOCAB * d + 4 * n_pad * d
    if training:
        bytes_accessed += 4 * n_pad * d
    cost = pl.CostEstimate(flops=12 * n_pad * d, transcendentals=0,
                           bytes_accessed=bytes_accessed)

    kernel = functools.partial(distance_kernel, training=training,
                               transposed=transposed_output)

    out = pl.pallas_call(
        kernel,
        out_shape=out_shape,
        grid=(num_tiles,),
        in_specs=in_specs,
        out_specs=data_spec,
        compiler_params=pltpu.CompilerParams(
            dimension_semantics=("parallel",),        # shard tiles across TCs
            vmem_limit_bytes=vmem_limit_bytes),
        cost_estimate=cost,
    )(*inputs)

    if transposed_output:
        return out[:, :n]          # (D, N) lane-dense
    return out[:n]                 # (N, D) module layout


def reference_forward(lengths, emb_table):
    """Pure-JAX reference of stoi + embedding lookup (eval mode)."""
    bins = jnp.arange(BINS_LO, BINS_LO + NUM_BINS, dtype=jnp.int32)
    idx = jnp.sum(lengths[:, None] >= bins[None, :], axis=1)
    return emb_table[idx]


if __name__ == "__main__":
    key = jax.random.PRNGKey(0)
    k_len, k_emb, k_drop = jax.random.split(key, 3)

    # Deterministic parameters: embedding table (8, 20), like nn.Embedding init.
    emb_table = jax.random.normal(k_emb, (VOCAB, DISTANCE_DIM), dtype=jnp.float32)

    # Example "lengths" input: a small batch of 16 signed span widths.
    lengths = jax.random.randint(k_len, (16,), minval=-6, maxval=8, dtype=jnp.int32)

    ref = reference_forward(lengths, emb_table)

    # Eval path, module layout (Dropout = identity): must match the reference.
    out = jax.block_until_ready(distance_forward(lengths, emb_table))
    assert out.shape == (16, DISTANCE_DIM)
    assert jnp.allclose(out, ref, atol=1e-6), "eval-mode mismatch vs reference"

    # Eval path, lane-dense transposed layout (for fused consumers).
    out_t = jax.block_until_ready(
        distance_forward(lengths, emb_table, transposed_output=True))
    assert out_t.shape == (DISTANCE_DIM, 16)
    assert jnp.allclose(out_t, ref.T, atol=1e-6), "transposed eval mismatch"

    # Training path (fused Dropout(0.2)): each element must be either 0
    # (dropped) or ref / 0.8 (kept & rescaled).
    out_tr = jax.block_until_ready(
        distance_forward(lengths, emb_table, training=True, rng=k_drop))
    scaled = ref / (1.0 - DROP_P)
    ok = (jnp.abs(out_tr) < 1e-6) | (jnp.abs(out_tr - scaled) < 1e-4)
    assert out_tr.shape == (16, DISTANCE_DIM)
    assert bool(jnp.all(ok)), "training-mode dropout output inconsistent"

    print("KERNEL_OK")
</pallas_src>

<mosaic_0001>
module attributes {stable_mosaic.version = 11 : i64} {
  func.func @distance_kernel(%arg0: i32, %arg1: memref<16x1xi32, #tpu.memory_space<vmem>>, %arg2: memref<8x20xf32, #tpu.memory_space<vmem>>, %arg3: memref<16x20xf32, #tpu.memory_space<vmem>>) attributes {dimension_semantics = [#tpu.dimension_semantics<parallel>], iteration_bounds = array<i64: 1>, scalar_prefetch = 0 : i64, scratch_operands = 0 : i64, tpu.core_type = #tpu.core_type<tc>, window_params = [{transform_indices = @transform_0, window_bounds = array<i64: 16, 1>}, {pipeline_mode = #tpu.pipeline_mode<synchronous>, transform_indices = @transform_1, window_bounds = array<i64: 8, 20>}, {transform_indices = @transform_2, window_bounds = array<i64: 16, 20>}]} {
    %c0 = arith.constant 0 : index
    %c0_0 = arith.constant 0 : index
    %0 = vector.load %arg1[%c0, %c0_0] : memref<16x1xi32, #tpu.memory_space<vmem>>, vector<16x1xi32>
    %c-4_i32 = arith.constant -4 : i32
    %1 = vector.broadcast %c-4_i32 : i32 to vector<16x1xi32>
    %2 = arith.subi %0, %1 : vector<16x1xi32>
    %c0_i32 = arith.constant 0 : i32
    %c7_i32 = arith.constant 7 : i32
    %3 = vector.broadcast %c0_i32 : i32 to vector<16x1xi32>
    %4 = arith.maxsi %3, %2 : vector<16x1xi32>
    %5 = vector.broadcast %c7_i32 : i32 to vector<16x1xi32>
    %6 = arith.minsi %5, %4 : vector<16x1xi32>
    %c0_1 = arith.constant 0 : index
    %c0_2 = arith.constant 0 : index
    %7 = vector.load %arg2[%c0_1, %c0_2] : memref<8x20xf32, #tpu.memory_space<vmem>>, vector<8x20xf32>
    %8 = vector.extract_strided_slice %7 {offsets = [0, 0], sizes = [1, 20], strides = [1, 1]} : vector<8x20xf32> to vector<1x20xf32>
    %9 = vector.extract_strided_slice %7 {offsets = [1, 0], sizes = [1, 20], strides = [1, 1]} : vector<8x20xf32> to vector<1x20xf32>
    %10 = vector.extract_strided_slice %7 {offsets = [2, 0], sizes = [1, 20], strides = [1, 1]} : vector<8x20xf32> to vector<1x20xf32>
    %11 = vector.extract_strided_slice %7 {offsets = [3, 0], sizes = [1, 20], strides = [1, 1]} : vector<8x20xf32> to vector<1x20xf32>
    %12 = vector.extract_strided_slice %7 {offsets = [4, 0], sizes = [1, 20], strides = [1, 1]} : vector<8x20xf32> to vector<1x20xf32>
    %13 = vector.extract_strided_slice %7 {offsets = [5, 0], sizes = [1, 20], strides = [1, 1]} : vector<8x20xf32> to vector<1x20xf32>
    %14 = vector.extract_strided_slice %7 {offsets = [6, 0], sizes = [1, 20], strides = [1, 1]} : vector<8x20xf32> to vector<1x20xf32>
    %15 = vector.extract_strided_slice %7 {offsets = [7, 0], sizes = [1, 20], strides = [1, 1]} : vector<8x20xf32> to vector<1x20xf32>
    %c1_i32 = arith.constant 1 : i32
    %16 = vector.broadcast %c1_i32 : i32 to vector<16x1xi32>
    %17 = arith.andi %6, %16 : vector<16x1xi32>
    %c0_i32_3 = arith.constant 0 : i32
    %18 = vector.broadcast %c0_i32_3 : i32 to vector<16x1xi32>
    %19 = arith.cmpi ne, %17, %18 : vector<16x1xi32>
    %c2_i32 = arith.constant 2 : i32
    %20 = vector.broadcast %c2_i32 : i32 to vector<16x1xi32>
    %21 = arith.andi %6, %20 : vector<16x1xi32>
    %c0_i32_4 = arith.constant 0 : i32
    %22 = vector.broadcast %c0_i32_4 : i32 to vector<16x1xi32>
    %23 = arith.cmpi ne, %21, %22 : vector<16x1xi32>
    %c4_i32 = arith.constant 4 : i32
    %24 = vector.broadcast %c4_i32 : i32 to vector<16x1xi32>
    %25 = arith.andi %6, %24 : vector<16x1xi32>
    %c0_i32_5 = arith.constant 0 : i32
    %26 = vector.broadcast %c0_i32_5 : i32 to vector<16x1xi32>
    %27 = arith.cmpi ne, %25, %26 : vector<16x1xi32>
    %28 = vector.shape_cast %19 : vector<16x1xi1> to vector<16x1xi1>
    %29 = vector.broadcast %28 : vector<16x1xi1> to vector<16x20xi1>
    %30 = vector.shape_cast %9 : vector<1x20xf32> to vector<1x20xf32>
    %31 = vector.broadcast %30 : vector<1x20xf32> to vector<16x20xf32>
    %32 = vector.shape_cast %8 : vector<1x20xf32> to vector<1x20xf32>
    %33 = vector.broadcast %32 : vector<1x20xf32> to vector<16x20xf32>
    %34 = arith.select %29, %31, %33 : vector<16x20xi1>, vector<16x20xf32>
    %35 = vector.shape_cast %19 : vector<16x1xi1> to vector<16x1xi1>
    %36 = vector.broadcast %35 : vector<16x1xi1> to vector<16x20xi1>
    %37 = vector.shape_cast %11 : vector<1x20xf32> to vector<1x20xf32>
    %38 = vector.broadcast %37 : vector<1x20xf32> to vector<16x20xf32>
    %39 = vector.shape_cast %10 : vector<1x20xf32> to vector<1x20xf32>
    %40 = vector.broadcast %39 : vector<1x20xf32> to vector<16x20xf32>
    %41 = arith.select %36, %38, %40 : vector<16x20xi1>, vector<16x20xf32>
    %42 = vector.shape_cast %19 : vector<16x1xi1> to vector<16x1xi1>
    %43 = vector.broadcast %42 : vector<16x1xi1> to vector<16x20xi1>
    %44 = vector.shape_cast %13 : vector<1x20xf32> to vector<1x20xf32>
    %45 = vector.broadcast %44 : vector<1x20xf32> to vector<16x20xf32>
    %46 = vector.shape_cast %12 : vector<1x20xf32> to vector<1x20xf32>
    %47 = vector.broadcast %46 : vector<1x20xf32> to vector<16x20xf32>
    %48 = arith.select %43, %45, %47 : vector<16x20xi1>, vector<16x20xf32>
    %49 = vector.shape_cast %19 : vector<16x1xi1> to vector<16x1xi1>
    %50 = vector.broadcast %49 : vector<16x1xi1> to vector<16x20xi1>
    %51 = vector.shape_cast %15 : vector<1x20xf32> to vector<1x20xf32>
    %52 = vector.broadcast %51 : vector<1x20xf32> to vector<16x20xf32>
    %53 = vector.shape_cast %14 : vector<1x20xf32> to vector<1x20xf32>
    %54 = vector.broadcast %53 : vector<1x20xf32> to vector<16x20xf32>
    %55 = arith.select %50, %52, %54 : vector<16x20xi1>, vector<16x20xf32>
    %56 = vector.shape_cast %23 : vector<16x1xi1> to vector<16x1xi1>
    %57 = vector.broadcast %56 : vector<16x1xi1> to vector<16x20xi1>
    %58 = arith.select %57, %41, %34 : vector<16x20xi1>, vector<16x20xf32>
    %59 = vector.shape_cast %23 : vector<16x1xi1> to vector<16x1xi1>
    %60 = vector.broadcast %59 : vector<16x1xi1> to vector<16x20xi1>
    %61 = arith.select %60, %55, %48 : vector<16x20xi1>, vector<16x20xf32>
    %62 = vector.shape_cast %27 : vector<16x1xi1> to vector<16x1xi1>
    %63 = vector.broadcast %62 : vector<16x1xi1> to vector<16x20xi1>
    %64 = arith.select %63, %61, %58 : vector<16x20xi1>, vector<16x20xf32>
    %c0_6 = arith.constant 0 : index
    %c0_7 = arith.constant 0 : index
    %65 = vector.load %arg3[%c0_6, %c0_7] : memref<16x20xf32, #tpu.memory_space<vmem>>, vector<16x20xf32>
    tpu.vector_store %arg3[%c0_6, %c0_7], %64 {strides = array<i32>} : memref<16x20xf32, #tpu.memory_space<vmem>>, vector<16x20xf32>,
    return
  }
  func.func @transform_0(%arg0: i32) -> (i32, i32) {
    %c0_i32 = arith.constant 0 : i32
    %c0_i32_0 = arith.constant 0 : i32
    return %arg0, %c0_i32 : i32, i32
  }
  func.func @transform_1(%arg0: i32) -> (i32, i32) {
    %c0_i32 = arith.constant 0 : i32
    %c0_i32_0 = arith.constant 0 : i32
    %c0_i32_1 = arith.constant 0 : i32
    return %c0_i32, %c0_i32_0 : i32, i32
  }
  func.func @transform_2(%arg0: i32) -> (i32, i32) {
    %c0_i32 = arith.constant 0 : i32
    %c0_i32_0 = arith.constant 0 : i32
    return %arg0, %c0_i32 : i32, i32
  }
}

</mosaic_0001>

<llo_original>
// kernel: tpu_custom_call.1
$region0: #{tpu_custom_call.1}
  #allocation0 [shape = 'u32[]', space=smem, size = 0x4, offset = 0x4, fixed_abs, tag = 'smem constant byte address 0x4 - core index']
  #allocation1 [shape = 'u32[144,128]{1,0:T(1,128)}', space=vmem, size = 0x12000, scoped, tag = 'internal scratch']
  %s0 = inlined_call_operand.vmem [shape: s32[16,1], index: 0, kind: input, shape index: {}]
  %s1 = inlined_call_operand.vmem [shape: f32[8,20], index: 1, kind: input, shape index: {}]
  %s2 = inlined_call_operand.hbm [shape: f32[16,20], index: 2, kind: output, shape index: {}]
  %s3 = sld [smem:[#allocation0]]
  $region18: #{tpu_custom_call.1} parent=0
    _
  %s5 = ssub.s32 1, %s3
  %s6 = scalar_select 0, %s5, %s3
  $region1: #{tpu_custom_call.1} parent=0
    #allocation2 [shape = 'u8[8192]{0}', space=vmem, size = 0x2000, scoped, tag = 'output window, operand 0, single buffered']
    #allocation3 [shape = 's32[1]{0}', space=sflag, size = 0x4, scoped, tag = 'scoped memory for tpu_custom_call.1']
    %7 = vsyncpa [#allocation3], 0
    // Predicated region
    $region2: #{tpu_custom_call.1} parent=1 // pred_check
      _
    $region3: #{tpu_custom_call.1} parent=1 // pred_check_branch
      %9 = sbr.rel (0) target = $region5
    $region4: #{tpu_custom_call.1} parent=1 // pred_region
      _
    $region5: #{tpu_custom_call.1} parent=1 // pred_fallthru
      _
    // Predicated region
    $region6: #{tpu_custom_call.1} parent=1 // pred_check
      _
    $region7: #{tpu_custom_call.1} parent=1 // pred_check_branch
      %11 = sbr.rel (0) target = $region9
    $region8: #{tpu_custom_call.1} parent=1 // pred_region
      _
    $region9: #{tpu_custom_call.1} parent=1 // pred_fallthru
      _
    %v12 = vld [vmem:[%s0] sm:$0xff]
    %v13 = vld [vmem:[%s0 + $0x8] sm:$0xff]
    %v14 = vsub.s32 %v12, 4294967292
    %v15 = vsub.s32 %v13, 4294967292
    %vm16 = vcmp.gt.s32.totalorder %v14, 0
    %v17 = vsel %vm16, %v14, 0
    %vm18 = vcmp.gt.s32.totalorder %v15, 0
    %v19 = vsel %vm18, %v15, 0
    %vm20 = vcmp.lt.s32.totalorder %v17, 7
    %v21 = vsel %vm20, %v17, 7
    %vm22 = vcmp.lt.s32.totalorder %v19, 7
    %v23 = vsel %vm22, %v19, 7
    %v24 = vld [vmem:[%s1] sm:$0xff]
    %v25 = vand.u32 %v21, 1
    %v26 = vand.u32 %v23, 1
    %vm27 = vcmp.ne.s32.totalorder %v25, 0
    %vm28 = vcmp.ne.s32.totalorder %v26, 0
    %v29 = vand.u32 %v21, 2
    %v30 = vand.u32 %v23, 2
    %vm31 = vcmp.ne.s32.totalorder %v29, 0
    %vm32 = vcmp.ne.s32.totalorder %v30, 0
    %v33 = vand.u32 %v21, 4
    %v34 = vand.u32 %v23, 4
    %vm35 = vcmp.ne.s32.totalorder %v33, 0
    %vm36 = vcmp.ne.s32.totalorder %v34, 0
    %v37 = vsel %vm27, 1, 0
    %v38 = vsel %vm28, 1, 0
    %39 = vset.pattern.permute.xlu0 0
    %40 = vperm.xlu0 %39, %v37
    %v41 = vpop.permute.xlu0 %40
    %42 = vset.pattern.permute.xlu0 0
    %43 = vperm.xlu0 %42, %v38
    %v44 = vpop.permute.xlu0 %43
    %vm45 = vcmp.eq.s32.totalorder %v41, 1
    %vm46 = vcmp.eq.s32.totalorder %v44, 1
    %v47 = vlaneseq
    %v48 = vshrl.u32 %v47, 7
    %v49 = vsub.s32 1, %v48
    %v50 = vrot.slane %v24, %v49
    %v51 = vlaneseq
    %v52 = vshrl.u32 %v51, 7
    %v53 = vsub.s32 0, %v52
    %v54 = vrot.slane %v24, %v53
    %v55 = vsel %vm45, %v50, %v54
    %v56 = vsel %vm46, %v50, %v54
    %v57 = vlaneseq
    %v58 = vshrl.u32 %v57, 7
    %v59 = vsub.s32 3, %v58
    %v60 = vrot.slane %v24, %v59
    %v61 = vlaneseq
    %v62 = vshrl.u32 %v61, 7
    %v63 = vsub.s32 2, %v62
    %v64 = vrot.slane %v24, %v63
    %v65 = vsel %vm45, %v60, %v64
    %v66 = vsel %vm46, %v60, %v64
    %v67 = vlaneseq
    %v68 = vshrl.u32 %v67, 7
    %v69 = vsub.s32 5, %v68
    %v70 = vrot.slane %v24, %v69
    %v71 = vlaneseq
    %v72 = vshrl.u32 %v71, 7
    %v73 = vsub.s32 4, %v72
    %v74 = vrot.slane %v24, %v73
    %v75 = vsel %vm45, %v70, %v74
    %v76 = vsel %vm46, %v70, %v74
    %v77 = vlaneseq
    %v78 = vshrl.u32 %v77, 7
    %v79 = vsub.s32 7, %v78
    %v80 = vrot.slane %v24, %v79
    %v81 = vlaneseq
    %v82 = vshrl.u32 %v81, 7
    %v83 = vsub.s32 6, %v82
    %v84 = vrot.slane %v24, %v83
    %v85 = vsel %vm45, %v80, %v84
    %v86 = vsel %vm46, %v80, %v84
    %v87 = vsel %vm31, 1, 0
    %v88 = vsel %vm32, 1, 0
    %89 = vset.pattern.permute.xlu0 0
    %90 = vperm.xlu0 %89, %v87
    %v91 = vpop.permute.xlu0 %90
    %92 = vset.pattern.permute.xlu0 0
    %93 = vperm.xlu0 %92, %v88
    %v94 = vpop.permute.xlu0 %93
    %vm95 = vcmp.eq.s32.totalorder %v91, 1
    %vm96 = vcmp.eq.s32.totalorder %v94, 1
    %v97 = vsel %vm95, %v65, %v55
    %v98 = vsel %vm96, %v66, %v56
    %v99 = vsel %vm95, %v85, %v75
    %v100 = vsel %vm96, %v86, %v76
    %v101 = vsel %vm35, 1, 0
    %v102 = vsel %vm36, 1, 0
    %103 = vset.pattern.permute.xlu0 0
    %104 = vperm.xlu0 %103, %v101
    %v105 = vpop.permute.xlu0 %104
    %106 = vset.pattern.permute.xlu0 0
    %107 = vperm.xlu0 %106, %v102
    %v108 = vpop.permute.xlu0 %107
    %vm109 = vcmp.eq.s32.totalorder %v105, 1
    %vm110 = vcmp.eq.s32.totalorder %v108, 1
    %v111 = vsel %vm109, %v99, %v97
    %v112 = vsel %vm110, %v100, %v98
    %vm113 = vcmask 162816
    %114 = vst.msk [vmem:[#allocation2] sm:$0xff] %vm113, %v111
    %115 = vst.msk [vmem:[#allocation2 + $0x8] sm:$0xff] %vm113, %v112
    // Predicated region
    $region10: #{tpu_custom_call.1} parent=1 // pred_check
      _
    $region11: #{tpu_custom_call.1} parent=1 // pred_check_branch
      %117 = sbr.rel (0) target = $region13
    $region12: #{tpu_custom_call.1} parent=1 // pred_region
      %s119 = ssub.s32 256, 256
      %120 = vsyncadd [#allocation3], %s119
      %s121 = sshll.u32 [#allocation2], 4
      %s122 = int_to_ptr.vmem [resolvable:$true] %s121
      %127 = dma.vmem_to_hbm [thread:$0]  %s122, 256, %s2, [#allocation3], 128, 128, 8
    $region13: #{tpu_custom_call.1} parent=1 // pred_fallthru
      _
    // Predicated region
    $region14: #{tpu_custom_call.1} parent=1 // pred_check
      _
    $region15: #{tpu_custom_call.1} parent=1 // pred_check_branch
      %129 = sbr.rel (0) target = $region17
    $region16: #{tpu_custom_call.1} parent=1 // pred_region
      %130 = dma.done [#allocation3], 256
    $region17: #{tpu_custom_call.1} parent=1 // pred_fallthru
      _
    %131 = vsyncpa [#allocation3], 1

</llo_original>
